<compile_context>
chip_gen: v6e
topology: v6e:2x2x1
jax: 0.10.0
libtpu: 0.0.40
codegen_flags: <defaults>
</compile_context>

<pallas_src>
import functools
import math
from typing import NamedTuple, Optional

import jax
import jax.numpy as jnp
from jax import lax
from jax.experimental import pallas as pl
from jax.experimental.pallas import tpu as pltpu

_TWO_PI = 2.0 * math.pi
_LANE = 128
# ~1 MiB per x/out block: ~85% of HBM roofline per the documented tile sweep,
# and 2 (x) + 2 (out) double-buffered blocks + in-kernel intermediates stay
# comfortably inside the 16 MiB v5e scoped-VMEM default.
_TARGET_BLOCK_BYTES = 1 << 20


class GFPParams(NamedTuple):
    """Init-time prepared parameters (all f32)."""
    w_row: jax.Array                        # (1, H)   Gaussian frequencies
    wd_sin: jax.Array                       # (H, D)   dense rows hit by sin
    wd_cos: jax.Array                       # (H, D)   dense rows hit by cos
    b_row: jax.Array                        # (1, D)
    wd_sin_rep: Optional[jax.Array] = None  # (H, k*D) lane-tiled (3D fold)
    wd_cos_rep: Optional[jax.Array] = None  # (H, k*D)
    b_rep: Optional[jax.Array] = None       # (1, k*D)


# --------------------------------------------------------------------------
# Kernels
# --------------------------------------------------------------------------
def _fourier_dense_f32(t, w, ws_ref, wc_ref, b_ref):
    """dense(t_emb) in f32.  Angle is elementwise (VPU), same association
    order as the reference; the concat([sin,cos])[:, :D] of the original is
    replaced by two accumulating MXU matmuls on pre-split weight rows."""
    proj = t * w * _TWO_PI                                     # (tB, H)
    y = jnp.dot(jnp.sin(proj), ws_ref[...],
                preferred_element_type=jnp.float32,
                precision=lax.Precision.HIGHEST)               # (tB, Dout)
    y = y + jnp.dot(jnp.cos(proj), wc_ref[...],
                    preferred_element_type=jnp.float32,
                    precision=lax.Precision.HIGHEST)
    return y + b_ref[...]


def _gfp2d_kernel(t_ref, w_ref, ws_ref, wc_ref, b_ref, x_ref, o_ref):
    # x_ref/o_ref: (tB, D); residual add in f32, single cast on store.
    y = _fourier_dense_f32(t_ref[...], w_ref[...], ws_ref, wc_ref, b_ref)
    o_ref[...] = (x_ref[...].astype(jnp.float32) + y).astype(o_ref.dtype)


def _gfp3d_kernel(t_ref, w_ref, ws_ref, wc_ref, b_ref, x_ref, o_ref):
    # x_ref/o_ref: (tB, tT, Dout).  dense(t_emb) is recomputed each step (it
    # is tiny), so there is no scratch carry and every grid axis is parallel.
    y = _fourier_dense_f32(t_ref[...], w_ref[...], ws_ref, wc_ref, b_ref)
    o_ref[...] = (x_ref[...].astype(jnp.float32)
                  + y[:, None, :]).astype(o_ref.dtype)


# --------------------------------------------------------------------------
# One-time parameter preparation (module init) — hoisted off the call path.
# --------------------------------------------------------------------------
def prepare_params(W, dense_w, dense_b) -> GFPParams:
    d_model = int(dense_w.shape[0])
    h = (d_model + 1) // 2
    wd_t = jnp.asarray(dense_w, jnp.float32).T                 # (in, out)
    wd_sin = wd_t[:h]                                          # (H, D)
    wd_cos = wd_t[h:d_model]                                   # (D-H, D)
    pad = h - wd_cos.shape[0]                                  # 1 iff D odd
    if pad:
        # Odd d_model: the truncated cos feature hits a zero row, which
        # reproduces `embeddings[:, :d_model]` with no in-kernel slice.
        wd_cos = jnp.concatenate(
            [wd_cos, jnp.zeros((pad, d_model), jnp.float32)], axis=0)
    w_row = jnp.asarray(W, jnp.float32).reshape(1, h)
    b_row = jnp.asarray(dense_b, jnp.float32).reshape(1, d_model)

    wd_sin_rep = wd_cos_rep = b_rep = None
    if d_model < _LANE and _LANE % d_model == 0:
        # Lane-tiled weights for the folded (B, T//k, k*D) 3D path: the kernel
        # output is then already lane-dense with zero extra work.
        k = _LANE // d_model
        wd_sin_rep = jnp.tile(wd_sin, (1, k))
        wd_cos_rep = jnp.tile(wd_cos, (1, k))
        b_rep = jnp.tile(b_row, (1, k))
    return GFPParams(w_row, wd_sin, wd_cos, b_row,
                     wd_sin_rep, wd_cos_rep, b_rep)


# --------------------------------------------------------------------------
# Tile selection (static shapes only)
# --------------------------------------------------------------------------
def _pick_rows_2d(n_rows, row_bytes):
    rows = max(1, _TARGET_BLOCK_BYTES // row_bytes)
    if n_rows <= rows:
        return n_rows                       # full dim is always legal
    return max(8, (rows // 8) * 8)          # multiple of 8 (sublane dim)


def _pick_tiles_3d(B, T, row_bytes):
    t_rows = max(1, _TARGET_BLOCK_BYTES // row_bytes)
    tT = T if T <= t_rows else max(8, (t_rows // 8) * 8)
    b_rows = max(1, _TARGET_BLOCK_BYTES // (tT * row_bytes))
    tB = B if B <= b_rows else max(8, (b_rows // 8) * 8)
    return tB, tT


# --------------------------------------------------------------------------
# pallas_call wrappers
# --------------------------------------------------------------------------
def _call_2d(x, t_col, w_row, wd_sin, wd_cos, b_row):
    B, D = x.shape
    H = w_row.shape[1]
    tB = _pick_rows_2d(B, D * x.dtype.itemsize)
    inv = lambda i: (0, 0)                                     # resident params
    return pl.pallas_call(
        _gfp2d_kernel,
        out_shape=jax.ShapeDtypeStruct((B, D), x.dtype),
        grid=(pl.cdiv(B, tB),),
        in_specs=[
            pl.BlockSpec((tB, 1), lambda i: (i, 0)),           # timesteps
            pl.BlockSpec((1, H), inv),                         # W
            pl.BlockSpec((H, D), inv),                         # dense (sin rows)
            pl.BlockSpec((H, D), inv),                         # dense (cos rows)
            pl.BlockSpec((1, D), inv),                         # bias
            pl.BlockSpec((tB, D), lambda i: (i, 0)),           # residual x
        ],
        out_specs=pl.BlockSpec((tB, D), lambda i: (i, 0)),
        compiler_params=pltpu.CompilerParams(
            dimension_semantics=("parallel",)),
    )(t_col, w_row, wd_sin, wd_cos, b_row, x)


def _call_3d(x, t_col, w_row, ws, wc, b_row):
    B, T, Dw = x.shape
    H = w_row.shape[1]
    tB, tT = _pick_tiles_3d(B, T, Dw * x.dtype.itemsize)
    inv = lambda bi, ti: (0, 0)
    return pl.pallas_call(
        _gfp3d_kernel,
        out_shape=jax.ShapeDtypeStruct((B, T, Dw), x.dtype),
        grid=(pl.cdiv(B, tB), pl.cdiv(T, tT)),
        in_specs=[
            pl.BlockSpec((tB, 1), lambda bi, ti: (bi, 0)),     # timesteps
            pl.BlockSpec((1, H), inv),                         # W
            pl.BlockSpec((H, Dw), inv),                        # dense (sin rows)
            pl.BlockSpec((H, Dw), inv),                        # dense (cos rows)
            pl.BlockSpec((1, Dw), inv),                        # bias
            pl.BlockSpec((tB, tT, Dw), lambda bi, ti: (bi, ti, 0)),
        ],
        out_specs=pl.BlockSpec((tB, tT, Dw), lambda bi, ti: (bi, ti, 0)),
        compiler_params=pltpu.CompilerParams(
            dimension_semantics=("parallel", "parallel")),     # megacore-ready
    )(t_col, w_row, ws, wc, b_row, x)


@functools.partial(jax.jit, static_argnames=("use_time_axis",))
def gaussian_fourier_projection(x, timesteps, params: GFPParams,
                                use_time_axis=False):
    """JAX/Pallas equivalent of GaussianFourierProjection.forward.

    x          : (B, D) if use_time_axis=False, else (B, T, D)
    timesteps  : (B,)
    params     : output of prepare_params (init-time).
    """
    t_col = timesteps.astype(jnp.float32).reshape(-1, 1)
    if use_time_axis:
        assert x.ndim == 3, "use_time_axis=True expects x of shape (B, T, D)"
        B, T, D = x.shape
        fold = None
        if params.wd_sin_rep is not None:
            fold = params.wd_sin_rep.shape[1] // params.wd_sin.shape[1]
        if fold is not None and fold > 1 and T % fold == 0:
            # Free contiguous reshape -> 128-lane-dense blocks; y already
            # folded via the lane-tiled weights.
            x_work = x.reshape(B, T // fold, fold * D)
            out = _call_3d(x_work, t_col, params.w_row,
                           params.wd_sin_rep, params.wd_cos_rep, params.b_rep)
            return out.reshape(B, T, D)
        return _call_3d(x, t_col, params.w_row,
                        params.wd_sin, params.wd_cos, params.b_row)
    assert x.ndim == 2, "use_time_axis=False expects x of shape (B, D)"
    return _call_2d(x, t_col, params.w_row,
                    params.wd_sin, params.wd_cos, params.b_row)


# --------------------------------------------------------------------------
# Demo / correctness check
# --------------------------------------------------------------------------
if __name__ == "__main__":
    key = jax.random.PRNGKey(0)

    def reference(x, timesteps, W, dense_w, dense_b, use_time_axis=False):
        proj = timesteps[:, None] * W[None, :] * _TWO_PI
        emb = jnp.concatenate([jnp.sin(proj), jnp.cos(proj)], axis=-1)
        t_emb = emb[:, : dense_w.shape[0]]
        y = jnp.dot(t_emb, dense_w.T,
                    precision=lax.Precision.HIGHEST) + dense_b
        if use_time_axis:
            y = y[:, None, :]
        return x + y

    def init(k, d_model, scale=1.0):
        k1, k2, k3 = jax.random.split(k, 3)
        W = jax.random.normal(k1, ((d_model + 1) // 2,), jnp.float32) * scale
        bound = 1.0 / math.sqrt(d_model)
        dw = jax.random.uniform(k2, (d_model, d_model), jnp.float32,
                                -bound, bound)
        db = jax.random.uniform(k3, (d_model,), jnp.float32, -bound, bound)
        return W, dw, db

    # Tolerance covers MXU f32 accumulation-order / multi-pass differences and
    # transcendental-implementation differences at large (t*W*2pi) angles;
    # structural errors would be O(0.1-1).
    ATOL, RTOL = 2e-3, 1e-3

    # ---- 2D path, even d_model ------------------------------------------
    d_model, B, T = 32, 8, 4
    kp, kx, kt = jax.random.split(jax.random.fold_in(key, 0), 3)
    W, dense_w, dense_b = init(kp, d_model)
    params = prepare_params(W, dense_w, dense_b)       # one-time init prep
    x = jax.random.normal(kx, (B, d_model), jnp.float32)
    ts = jax.random.uniform(kt, (B,), jnp.float32, 0.0, 1000.0)
    out = jax.block_until_ready(gaussian_fourier_projection(x, ts, params))
    ref = reference(x, ts, W, dense_w, dense_b)
    assert jnp.allclose(out, ref, atol=ATOL, rtol=RTOL), "mismatch (2D)"

    # ---- 3D path, folded to 128 lanes (T % k == 0) ----------------------
    x3 = jax.random.normal(jax.random.fold_in(key, 1), (B, T, d_model),
                           jnp.float32)
    out3 = jax.block_until_ready(
        gaussian_fourier_projection(x3, ts, params, use_time_axis=True))
    ref3 = reference(x3, ts, W, dense_w, dense_b, use_time_axis=True)
    assert jnp.allclose(out3, ref3, atol=ATOL, rtol=RTOL), "mismatch (3D fold)"

    # ---- 3D path, unfolded fallback (T not divisible by k) --------------
    x3u = jax.random.normal(jax.random.fold_in(key, 2), (B, 3, d_model),
                            jnp.float32)
    out3u = jax.block_until_ready(
        gaussian_fourier_projection(x3u, ts, params, use_time_axis=True))
    ref3u = reference(x3u, ts, W, dense_w, dense_b, use_time_axis=True)
    assert jnp.allclose(out3u, ref3u, atol=ATOL, rtol=RTOL), "mismatch (3D)"

    # ---- odd d_model: cos truncation absorbed by zero-padded weights ----
    d_odd = 31
    kp2, kx2, kt2 = jax.random.split(jax.random.fold_in(key, 3), 3)
    W2, dw2, db2 = init(kp2, d_odd)
    params2 = prepare_params(W2, dw2, db2)
    x2 = jax.random.normal(kx2, (B, d_odd), jnp.float32)
    ts2 = jax.random.uniform(kt2, (B,), jnp.float32, 0.0, 1000.0)
    out2 = jax.block_until_ready(
        gaussian_fourier_projection(x2, ts2, params2))
    ref2 = reference(x2, ts2, W2, dw2, db2)
    assert jnp.allclose(out2, ref2, atol=ATOL, rtol=RTOL), "mismatch (odd D)"

    print("KERNEL_OK")
</pallas_src>

<mosaic_0001>
module attributes {stable_mosaic.version = 11 : i64} {
  func.func @_gfp2d_kernel(%arg0: i32, %arg1: memref<8x1xf32, #tpu.memory_space<vmem>>, %arg2: memref<1x16xf32, #tpu.memory_space<vmem>>, %arg3: memref<16x32xf32, #tpu.memory_space<vmem>>, %arg4: memref<16x32xf32, #tpu.memory_space<vmem>>, %arg5: memref<1x32xf32, #tpu.memory_space<vmem>>, %arg6: memref<8x32xf32, #tpu.memory_space<vmem>>, %arg7: memref<8x32xf32, #tpu.memory_space<vmem>>) attributes {dimension_semantics = [#tpu.dimension_semantics<parallel>], iteration_bounds = array<i64: 1>, scalar_prefetch = 0 : i64, scratch_operands = 0 : i64, tpu.core_type = #tpu.core_type<tc>, window_params = [{transform_indices = @transform_0, window_bounds = array<i64: 8, 1>}, {pipeline_mode = #tpu.pipeline_mode<synchronous>, transform_indices = @transform_1, window_bounds = array<i64: 1, 16>}, {pipeline_mode = #tpu.pipeline_mode<synchronous>, transform_indices = @transform_2, window_bounds = array<i64: 16, 32>}, {pipeline_mode = #tpu.pipeline_mode<synchronous>, transform_indices = @transform_3, window_bounds = array<i64: 16, 32>}, {pipeline_mode = #tpu.pipeline_mode<synchronous>, transform_indices = @transform_4, window_bounds = array<i64: 1, 32>}, {transform_indices = @transform_5, window_bounds = array<i64: 8, 32>}, {transform_indices = @transform_6, window_bounds = array<i64: 8, 32>}]} {
    %c0 = arith.constant 0 : index
    %c0_0 = arith.constant 0 : index
    %0 = vector.load %arg1[%c0, %c0_0] : memref<8x1xf32, #tpu.memory_space<vmem>>, vector<8x1xf32>
    %c0_1 = arith.constant 0 : index
    %c0_2 = arith.constant 0 : index
    %1 = vector.load %arg2[%c0_1, %c0_2] : memref<1x16xf32, #tpu.memory_space<vmem>>, vector<1x16xf32>
    %2 = vector.broadcast %0 : vector<8x1xf32> to vector<8x16xf32>
    %3 = vector.broadcast %1 : vector<1x16xf32> to vector<8x16xf32>
    %4 = arith.mulf %2, %3 : vector<8x16xf32>
    %cst = arith.constant 6.28318548 : f32
    %5 = vector.broadcast %cst : f32 to vector<8x16xf32>
    %6 = arith.mulf %4, %5 : vector<8x16xf32>
    %7 = math.sin %6 : vector<8x16xf32>
    %c0_3 = arith.constant 0 : index
    %c0_4 = arith.constant 0 : index
    %8 = vector.load %arg3[%c0_3, %c0_4] : memref<16x32xf32, #tpu.memory_space<vmem>>, vector<16x32xf32>
    %cst_5 = arith.constant dense<0.000000e+00> : vector<8x32xf32>
    %9 = tpu.matmul %7, %8, %cst_5 {dimension_numbers = #tpu.dot_dimension_numbers<[1], [0], [0], [1], [0, 0, 1, 1], [], []>, precision = #tpu.contract_precision<fp32>} : vector<8x16xf32>, vector<16x32xf32>, vector<8x32xf32> -> vector<8x32xf32>
    %10 = math.cos %6 : vector<8x16xf32>
    %c0_6 = arith.constant 0 : index
    %c0_7 = arith.constant 0 : index
    %11 = vector.load %arg4[%c0_6, %c0_7] : memref<16x32xf32, #tpu.memory_space<vmem>>, vector<16x32xf32>
    %cst_8 = arith.constant dense<0.000000e+00> : vector<8x32xf32>
    %12 = tpu.matmul %10, %11, %cst_8 {dimension_numbers = #tpu.dot_dimension_numbers<[1], [0], [0], [1], [0, 0, 1, 1], [], []>, precision = #tpu.contract_precision<fp32>} : vector<8x16xf32>, vector<16x32xf32>, vector<8x32xf32> -> vector<8x32xf32>
    %13 = arith.addf %9, %12 : vector<8x32xf32>
    %c0_9 = arith.constant 0 : index
    %c0_10 = arith.constant 0 : index
    %14 = vector.load %arg5[%c0_9, %c0_10] : memref<1x32xf32, #tpu.memory_space<vmem>>, vector<1x32xf32>
    %15 = vector.broadcast %14 : vector<1x32xf32> to vector<8x32xf32>
    %16 = arith.addf %13, %15 : vector<8x32xf32>
    %c0_11 = arith.constant 0 : index
    %c0_12 = arith.constant 0 : index
    %17 = vector.load %arg6[%c0_11, %c0_12] : memref<8x32xf32, #tpu.memory_space<vmem>>, vector<8x32xf32>
    %18 = arith.addf %17, %16 : vector<8x32xf32>
    %c0_13 = arith.constant 0 : index
    %c0_14 = arith.constant 0 : index
    %19 = vector.load %arg7[%c0_13, %c0_14] : memref<8x32xf32, #tpu.memory_space<vmem>>, vector<8x32xf32>
    tpu.vector_store %arg7[%c0_13, %c0_14], %18 {strides = array<i32>} : memref<8x32xf32, #tpu.memory_space<vmem>>, vector<8x32xf32>,
    return
  }
  func.func @transform_0(%arg0: i32) -> (i32, i32) {
    %c0_i32 = arith.constant 0 : i32
    %c0_i32_0 = arith.constant 0 : i32
    return %arg0, %c0_i32 : i32, i32
  }
  func.func @transform_1(%arg0: i32) -> (i32, i32) {
    %c0_i32 = arith.constant 0 : i32
    %c0_i32_0 = arith.constant 0 : i32
    %c0_i32_1 = arith.constant 0 : i32
    return %c0_i32, %c0_i32_0 : i32, i32
  }
  func.func @transform_2(%arg0: i32) -> (i32, i32) {
    %c0_i32 = arith.constant 0 : i32
    %c0_i32_0 = arith.constant 0 : i32
    %c0_i32_1 = arith.constant 0 : i32
    return %c0_i32, %c0_i32_0 : i32, i32
  }
  func.func @transform_3(%arg0: i32) -> (i32, i32) {
    %c0_i32 = arith.constant 0 : i32
    %c0_i32_0 = arith.constant 0 : i32
    %c0_i32_1 = arith.constant 0 : i32
    return %c0_i32, %c0_i32_0 : i32, i32
  }
  func.func @transform_4(%arg0: i32) -> (i32, i32) {
    %c0_i32 = arith.constant 0 : i32
    %c0_i32_0 = arith.constant 0 : i32
    %c0_i32_1 = arith.constant 0 : i32
    return %c0_i32, %c0_i32_0 : i32, i32
  }
  func.func @transform_5(%arg0: i32) -> (i32, i32) {
    %c0_i32 = arith.constant 0 : i32
    %c0_i32_0 = arith.constant 0 : i32
    return %arg0, %c0_i32 : i32, i32
  }
  func.func @transform_6(%arg0: i32) -> (i32, i32) {
    %c0_i32 = arith.constant 0 : i32
    %c0_i32_0 = arith.constant 0 : i32
    return %arg0, %c0_i32 : i32, i32
  }
}

</mosaic_0001>

<llo_original>
// kernel: gaussian_fourier_projection.1
$region0: #{gaussian_fourier_projection.1}
  #allocation0 [shape = 'u32[]', space=smem, size = 0x4, offset = 0x4, fixed_abs, tag = 'smem constant byte address 0x4 - core index']
  #allocation1 [shape = 'u32[144,128]{1,0:T(1,128)}', space=vmem, size = 0x12000, scoped, tag = 'internal scratch']
  %s0 = inlined_call_operand.vmem [shape: f32[8,1], index: 0, kind: input, shape index: {}]
  %s1 = inlined_call_operand.hbm [shape: f32[1,16], index: 1, kind: input, shape index: {}]
  %s2 = inlined_call_operand.vmem [shape: f32[16,32], index: 2, kind: input, shape index: {}]
  %s3 = inlined_call_operand.hbm [shape: f32[16,32], index: 3, kind: input, shape index: {}]
  %s4 = inlined_call_operand.vmem [shape: f32[1,32], index: 4, kind: input, shape index: {}]
  %s5 = inlined_call_operand.hbm [shape: f32[8,32], index: 5, kind: input, shape index: {}]
  %s6 = inlined_call_operand.hbm [shape: f32[8,32], index: 6, kind: output, shape index: {}]
  %s7 = sld [smem:[#allocation0]]
  $region46: #{gaussian_fourier_projection.1} parent=0
    _
  %s9 = ssub.s32 1, %s7
  %s10 = scalar_select 0, %s9, %s7
  $region1: #{gaussian_fourier_projection.1} parent=0
    #allocation2 [shape = 'u8[512]{0}', space=vmem, size = 0x400, scoped, tag = 'input window, operand 1, single buffered']
    #allocation3 [shape = 's32[1]{0}', space=sflag, size = 0x4, scoped, tag = 'scoped memory for gaussian_fourier_projection.1']
    #allocation4 [shape = 's32[1]{0}', space=sflag, size = 0x4, scoped, tag = 'scoped memory for gaussian_fourier_projection.1']
    #allocation5 [shape = 'u8[8192]{0}', space=vmem, size = 0x2000, scoped, tag = 'input window, operand 3, single buffered']
    #allocation6 [shape = 's32[1]{0}', space=sflag, size = 0x4, scoped, tag = 'scoped memory for gaussian_fourier_projection.1']
    #allocation7 [shape = 'u8[4096]{0}', space=vmem, size = 0x1000, scoped, tag = 'input window, operand 5, single buffered']
    #allocation8 [shape = 'u8[4096]{0}', space=vmem, size = 0x1000, scoped, tag = 'output window, operand 0, single buffered']
    %11 = vsyncpa [#allocation3], 0
    %12 = vsyncpa [#allocation6], 0
    %13 = vsyncpa [#allocation4], 0
    // Predicated region
    $region2: #{gaussian_fourier_projection.1} parent=1 // pred_check
      _
    $region3: #{gaussian_fourier_projection.1} parent=1 // pred_check_branch
      %15 = sbr.rel (0) target = $region5
    $region4: #{gaussian_fourier_projection.1} parent=1 // pred_region
      _
    $region5: #{gaussian_fourier_projection.1} parent=1 // pred_fallthru
      _
    // Predicated region
    $region6: #{gaussian_fourier_projection.1} parent=1 // pred_check
      _
    $region7: #{gaussian_fourier_projection.1} parent=1 // pred_check_branch
      %17 = sbr.rel (0) target = $region9
    $region8: #{gaussian_fourier_projection.1} parent=1 // pred_region
      %s19 = ssub.s32 16, 16
      %20 = vsyncadd [#allocation3], %s19
      %s22 = sshll.u32 [#allocation2], 4
      %s23 = int_to_ptr.vmem [resolvable:$true] %s22
      %25 = dma.hbm_to_vmem [thread:$0]  %s1, 16, %s23, [#allocation3]
    $region9: #{gaussian_fourier_projection.1} parent=1 // pred_fallthru
      _
    // Predicated region
    $region10: #{gaussian_fourier_projection.1} parent=1 // pred_check
      _
    $region11: #{gaussian_fourier_projection.1} parent=1 // pred_check_branch
      %27 = sbr.rel (0) target = $region13
    $region12: #{gaussian_fourier_projection.1} parent=1 // pred_region
      _
    $region13: #{gaussian_fourier_projection.1} parent=1 // pred_fallthru
      _
    // Predicated region
    $region14: #{gaussian_fourier_projection.1} parent=1 // pred_check
      _
    $region15: #{gaussian_fourier_projection.1} parent=1 // pred_check_branch
      %29 = sbr.rel (0) target = $region17
    $region16: #{gaussian_fourier_projection.1} parent=1 // pred_region
      %s31 = ssub.s32 256, 256
      %32 = vsyncadd [#allocation6], %s31
      %s33 = sshll.u32 [#allocation5], 4
      %s34 = int_to_ptr.vmem [resolvable:$true] %s33
      %39 = dma.hbm_to_vmem [thread:$0]  %s3, 256, %s34, [#allocation6], 128, 128, 8
    $region17: #{gaussian_fourier_projection.1} parent=1 // pred_fallthru
      _
    // Predicated region
    $region18: #{gaussian_fourier_projection.1} parent=1 // pred_check
      _
    $region19: #{gaussian_fourier_projection.1} parent=1 // pred_check_branch
      %41 = sbr.rel (0) target = $region21
    $region20: #{gaussian_fourier_projection.1} parent=1 // pred_region
      _
    $region21: #{gaussian_fourier_projection.1} parent=1 // pred_fallthru
      _
    // Predicated region
    $region22: #{gaussian_fourier_projection.1} parent=1 // pred_check
      _
    $region23: #{gaussian_fourier_projection.1} parent=1 // pred_check_branch
      %43 = sbr.rel (0) target = $region25
    $region24: #{gaussian_fourier_projection.1} parent=1 // pred_region
      %s45 = ssub.s32 128, 128
      %46 = vsyncadd [#allocation6], %s45
      %s48 = sshll.u32 [#allocation7], 4
      %s49 = int_to_ptr.vmem [resolvable:$true] %s48
      %51 = dma.hbm_to_vmem [thread:$0]  %s5, 128, %s49, [#allocation6]
    $region25: #{gaussian_fourier_projection.1} parent=1 // pred_fallthru
      _
    // Predicated region
    $region26: #{gaussian_fourier_projection.1} parent=1 // pred_check
      _
    $region27: #{gaussian_fourier_projection.1} parent=1 // pred_check_branch
      %53 = sbr.rel (0) target = $region29
    $region28: #{gaussian_fourier_projection.1} parent=1 // pred_region
      %54 = dma.done [#allocation3], 16
    $region29: #{gaussian_fourier_projection.1} parent=1 // pred_fallthru
      _
    // Predicated region
    $region30: #{gaussian_fourier_projection.1} parent=1 // pred_check
      _
    $region31: #{gaussian_fourier_projection.1} parent=1 // pred_check_branch
      %56 = sbr.rel (0) target = $region33
    $region32: #{gaussian_fourier_projection.1} parent=1 // pred_region
      %57 = dma.done [#allocation6], 256
    $region33: #{gaussian_fourier_projection.1} parent=1 // pred_fallthru
      _
    // Predicated region
    $region34: #{gaussian_fourier_projection.1} parent=1 // pred_check
      _
    $region35: #{gaussian_fourier_projection.1} parent=1 // pred_check_branch
      %59 = sbr.rel (0) target = $region37
    $region36: #{gaussian_fourier_projection.1} parent=1 // pred_region
      %60 = dma.done [#allocation6], 128
    $region37: #{gaussian_fourier_projection.1} parent=1 // pred_fallthru
      _
    %v61 = vld [vmem:[%s0] sm:$0xff]
    %v62 = vld [vmem:[#allocation2] sm:$0x1]
    %64 = vset.pattern.permute.xlu0 0
    %65 = vperm.xlu0 %64, %v61
    %v66 = vpop.permute.xlu0 %65
    %v69 = vlaneseq
    %v70 = vshrl.u32 %v69, 7
    %v71 = vsub.s32 0, %v70
    %v72 = vrot.slane %v62, %v71
    %v74 = vmul.f32 %v66, %v72
    %v75 = vmul.f32 %v74, 6.2831855
    %v76 = vand.u32 2147483647, %v75
    %vm77 = vcmp.le.f32.partialorder %v76, 0.7853982
    %vm78 = vcmp.lt.s32.totalorder %v75, 0
    %v79 = vand.u32 %v75, 2139095040
    %v80 = vshrl.u32 %v79, 23
    %v81 = vsub.s32 %v80, 127
    %v82 = vand.u32 2147483647, %v75
    %v83 = vand.u32 %v82, 8388607
    %v84 = vor.u32 %v83, 8388608
    %v85 = vsub.s32 0, %v84
    %v86 = vadd.s32 %v81, 1
    %vm87 = vcmp.gt.s32.totalorder %v86, 0
    %v88 = vsel %vm87, %v86, 0
    %v89 = vshrl.u32 %v88, 5
    %v90 = vand.u32 %v88, 31
    %v91 = vsub.s32 32, %v90
    %v92 = vshrl.u32 683565275, %v91
    %v93 = vshll.u32 683565275, %v90
    %v94 = vshrl.u32 2475754826, %v91
    %v95 = vor.u32 %v93, %v94
    %v96 = vshll.u32 2475754826, %v90
    %v97 = vshrl.u32 2131351028, %v91
    %v98 = vor.u32 %v96, %v97
    %v99 = vshll.u32 2131351028, %v90
    %v100 = vshrl.u32 2102212464, %v91
    %v101 = vor.u32 %v99, %v100
    %v102 = vshll.u32 2102212464, %v90
    %v103 = vshrl.u32 920167782, %v91
    %v104 = vor.u32 %v102, %v103
    %v105 = vshll.u32 920167782, %v90
    %v106 = vshrl.u32 1326507024, %v91
    %v107 = vor.u32 %v105, %v106
    %vm108 = vcmp.lt.s32.totalorder %v89, 1
    %vm109 = vcmp.lt.s32.totalorder %v89, 2
    %vm110 = vcmp.lt.s32.totalorder %v89, 3
    %vm111 = vcmp.lt.s32.totalorder %v89, 4
    %v112 = vsel %vm108, %v92, %v95
    %v113 = vsel %vm111, %v101, 2102212464
    %v114 = vsel %vm110, %v98, %v113
    %v115 = vsel %vm109, %v112, %v114
    %v116 = vsel %vm108, %v95, %v98
    %v117 = vsel %vm111, %v104, 920167782
    %v118 = vsel %vm110, %v101, %v117
    %v119 = vsel %vm109, %v116, %v118
    %v120 = vsel %vm108, %v98, %v101
    %v121 = vsel %vm111, %v107, 1326507024
    %v122 = vsel %vm110, %v104, %v121
    %v123 = vsel %vm109, %v120, %v122
    %v124 = vshll.u32 %v84, 8
    %v125 = vmul.u32.u64.compose %v124, %v123
    %v126 = vextract.low.u32 %v125
    %v127 = vextract.high.u32 %v125
    %v128 = vmul.u32.u64.compose %v124, %v119
    %v129 = vextract.low.u32 %v128
    %v130 = vextract.high.u32 %v128
    %v131 = vmul.u32 %v124, %v115
    %v132 = vadd.s32 %v127, %v129
    %vm133 = vc.u32 %v127, %v129
    %v134 = vadd.s32 %v130, 1
    %v135 = vsel %vm133, %v134, %v130
    %v136 = vadd.s32 %v131, %v135
    %v137 = vadd.s32 %v136, 536870912
    %v138 = vshrl.u32 %v137, 30
    %v139 = vshll.u32 %v138, 30
    %v140 = vsub.s32 %v136, %v139
    %vm141 = vcmp.lt.s32.totalorder %v140, 0
    %v142 = vsub.s32 0, %v140
    %v143 = vsel %vm141, %v142, %v140
    %v144 = vclz %v143
    %v145 = vsub.s32 %v144, 2
    %vm146 = vcmp.gt.s32.totalorder 0, %v145
    %v147 = vsel %vm146, 0, %v145
    %v148 = vsub.s32 32, %v147
    %v149 = vshll.u32 %v140, %v147
    %v150 = vshrl.u32 %v132, %v148
    %v151 = vor.u32 %v149, %v150
    %v152 = vsub.s32 4294967266, %v147
    %v153 = vadd.s32 %v152, 127
    %v154 = vshll.u32 %v153, 23
    %v155 = vor.u32 4788187, %v154
    %v156 = vand.u32 2147483647, %v155
    %v158 = vcvt.s32.f32 %v151
    %v159 = vmul.f32 %v158, %v156
    %v160 = vxor.u32 %v159, 2147483648
    %v161 = vsel %vm78, %v160, %v159
    %v162 = vsub.s32 4, %v138
    %v163 = vsel %vm78, %v162, %v138
    %v164 = vsel %vm77, %v75, %v161
    %v165 = vsel %vm77, 0, %v163
    %v166 = vcosq.f32.pop %v164
    %v167 = vsinq.f32.pop %v164
    %vm168 = vweird.f32 %v75
    %v169 = vadd.s32 %v165, 3
    %v170 = vand.u32 %v169, 3
    %vm171 = vcmp.lt.s32.totalorder %v170, 2
    %vm172 = vcmp.eq.s32.totalorder %v170, 0
    %v173 = vxor.u32 %v167, 2147483648
    %v174 = vsel %vm172, %v166, %v173
    %vm175 = vcmp.eq.s32.totalorder %v170, 2
    %v176 = vxor.u32 %v166, 2147483648
    %v177 = vsel %vm175, %v176, %v167
    %v178 = vsel %vm171, %v174, %v177
    %v179 = vsel %vm168, nan, %v178
    %v180 = vld [vmem:[%s2] sm:$0xff]
    %v181 = vld [vmem:[%s2 + $0x8] sm:$0xff]
    %v182 = vand.u32 2147483647, %v75
    %vm183 = vcmp.le.f32.partialorder %v182, 0.7853982
    %vm184 = vcmp.lt.s32.totalorder %v75, 0
    %v185 = vand.u32 %v75, 2139095040
    %v186 = vshrl.u32 %v185, 23
    %v187 = vsub.s32 %v186, 127
    %v188 = vand.u32 2147483647, %v75
    %v189 = vand.u32 %v188, 8388607
    %v190 = vor.u32 %v189, 8388608
    %v191 = vsub.s32 0, %v190
    %v192 = vadd.s32 %v187, 1
    %vm193 = vcmp.gt.s32.totalorder %v192, 0
    %v194 = vsel %vm193, %v192, 0
    %v195 = vshrl.u32 %v194, 5
    %v196 = vand.u32 %v194, 31
    %v197 = vsub.s32 32, %v196
    %v198 = vshrl.u32 683565275, %v197
    %v199 = vshll.u32 683565275, %v196
    %v200 = vshrl.u32 2475754826, %v197
    %v201 = vor.u32 %v199, %v200
    %v202 = vshll.u32 2475754826, %v196
    %v203 = vshrl.u32 2131351028, %v197
    %v204 = vor.u32 %v202, %v203
    %v205 = vshll.u32 2131351028, %v196
    %v206 = vshrl.u32 2102212464, %v197
    %v207 = vor.u32 %v205, %v206
    %v208 = vshll.u32 2102212464, %v196
    %v209 = vshrl.u32 920167782, %v197
    %v210 = vor.u32 %v208, %v209
    %v211 = vshll.u32 920167782, %v196
    %v212 = vshrl.u32 1326507024, %v197
    %v213 = vor.u32 %v211, %v212
    %vm214 = vcmp.lt.s32.totalorder %v195, 1
    %vm215 = vcmp.lt.s32.totalorder %v195, 2
    %vm216 = vcmp.lt.s32.totalorder %v195, 3
    %vm217 = vcmp.lt.s32.totalorder %v195, 4
    %v218 = vsel %vm214, %v198, %v201
    %v219 = vsel %vm217, %v207, 2102212464
    %v220 = vsel %vm216, %v204, %v219
    %v221 = vsel %vm215, %v218, %v220
    %v222 = vsel %vm214, %v201, %v204
    %v223 = vsel %vm217, %v210, 920167782
    %v224 = vsel %vm216, %v207, %v223
    %v225 = vsel %vm215, %v222, %v224
    %v226 = vsel %vm214, %v204, %v207
    %v227 = vsel %vm217, %v213, 1326507024
    %v228 = vsel %vm216, %v210, %v227
    %v229 = vsel %vm215, %v226, %v228
    %v230 = vshll.u32 %v190, 8
    %v231 = vmul.u32.u64.compose %v230, %v229
    %v232 = vextract.low.u32 %v231
    %v233 = vextract.high.u32 %v231
    %v234 = vmul.u32.u64.compose %v230, %v225
    %v235 = vextract.low.u32 %v234
    %v236 = vextract.high.u32 %v234
    %v237 = vmul.u32 %v230, %v221
    %v238 = vadd.s32 %v233, %v235
    %vm239 = vc.u32 %v233, %v235
    %v240 = vadd.s32 %v236, 1
    %v241 = vsel %vm239, %v240, %v236
    %v242 = vadd.s32 %v237, %v241
    %v243 = vadd.s32 %v242, 536870912
    %v244 = vshrl.u32 %v243, 30
    %v245 = vshll.u32 %v244, 30
    %v246 = vsub.s32 %v242, %v245
    %vm247 = vcmp.lt.s32.totalorder %v246, 0
    %v248 = vsub.s32 0, %v246
    %v249 = vsel %vm247, %v248, %v246
    %v250 = vclz %v249
    %v251 = vsub.s32 %v250, 2
    %vm252 = vcmp.gt.s32.totalorder 0, %v251
    %v253 = vsel %vm252, 0, %v251
    %v254 = vsub.s32 32, %v253
    %v255 = vshll.u32 %v246, %v253
    %v256 = vshrl.u32 %v238, %v254
    %v257 = vor.u32 %v255, %v256
    %v258 = vsub.s32 4294967266, %v253
    %v259 = vadd.s32 %v258, 127
    %v260 = vshll.u32 %v259, 23
    %v261 = vor.u32 4788187, %v260
    %v262 = vand.u32 2147483647, %v261
    %v264 = vcvt.s32.f32 %v257
    %v265 = vmul.f32 %v264, %v262
    %v266 = vxor.u32 %v265, 2147483648
    %v267 = vsel %vm184, %v266, %v265
    %v268 = vsub.s32 4, %v244
    %v269 = vsel %vm184, %v268, %v244
    %v270 = vsel %vm183, %v75, %v267
    %v271 = vsel %vm183, 0, %v269
    %v272 = vcosq.f32.pop %v270
    %v273 = vsinq.f32.pop %v270
    %vm274 = vweird.f32 %v75
    %v275 = vand.u32 %v271, 3
    %vm276 = vcmp.lt.s32.totalorder %v275, 2
    %vm277 = vcmp.eq.s32.totalorder %v275, 0
    %v278 = vxor.u32 %v273, 2147483648
    %v279 = vsel %vm277, %v272, %v278
    %vm280 = vcmp.eq.s32.totalorder %v275, 2
    %v281 = vxor.u32 %v272, 2147483648
    %v282 = vsel %vm280, %v281, %v273
    %v283 = vsel %vm276, %v279, %v282
    %v284 = vsel %vm274, nan, %v283
    %v285 = vld [vmem:[#allocation5] sm:$0xff]
    %v286 = vld [vmem:[#allocation5 + $0x8] sm:$0xff]
    %vm287 = vcmask 130048
    %v289 = vsel %vm287, %v284, 0
    %291 = vmatprep.subr.mxu0 0.0
    %292 = vmatpush1.msra.mxu0 0.0
    %293 = vmatprep.subr.mxu0 0.0
    %294 = vmatpush1.msra.mxu0 0.0
    %295 = vmatprep.subr.mxu0 0.0
    %296 = vmatpush1.msra.mxu0 0.0
    %297 = vmatprep.subr.mxu0 0.0
    %298 = vmatpush1.msra.mxu0 0.0
    %299 = vmatprep.subr.mxu0 0.0
    %300 = vmatpush1.msra.mxu0 0.0
    %301 = vmatprep.subr.mxu0 0.0
    %302 = vmatpush1.msra.mxu0 0.0
    %303 = vmatprep.subr.mxu0 0.0
    %304 = vmatpush1.msra.mxu0 0.0
    %305 = vmatprep.subr.mxu0 0.0
    %306 = vmatpush1.msra.mxu0 0.0
    %307 = vmatprep.subr.mxu0 0.0
    %308 = vmatpush1.msra.mxu0 0.0
    %309 = vmatprep.subr.mxu0 0.0
    %310 = vmatpush1.msra.mxu0 0.0
    %311 = vmatprep.subr.mxu0 0.0
    %312 = vmatpush1.msra.mxu0 0.0
    %313 = vmatprep.subr.mxu0 0.0
    %314 = vmatpush1.msra.mxu0 0.0
    %315 = vmatprep.subr.mxu0 0.0
    %316 = vmatpush1.msra.mxu0 0.0
    %317 = vmatprep.subr.mxu0 0.0
    %318 = vmatpush1.msra.mxu0 0.0
    %319 = vmatprep.subr.mxu0 0.0
    %v320 = vand.u32 %v286, 4294901760
    %321 = vmatpush1.msra.mxu0 %v320
    %322 = vmatprep.subr.mxu0 0.0
    %v323 = vand.u32 %v285, 4294901760
    %324 = vmatpush1.msra.mxu0 %v323
    %325 = vmatprep.subr.mxu0 0.0
    %326 = vmatpush2.msra.mxu0 0.0
    %327 = vmatprep.subr.mxu0 0.0
    %328 = vmatpush2.msra.mxu0 0.0
    %329 = vmatprep.subr.mxu0 0.0
    %330 = vmatpush2.msra.mxu0 0.0
    %331 = vmatprep.subr.mxu0 0.0
    %332 = vmatpush2.msra.mxu0 0.0
    %333 = vmatprep.subr.mxu0 0.0
    %334 = vmatpush2.msra.mxu0 0.0
    %335 = vmatprep.subr.mxu0 0.0
    %336 = vmatpush2.msra.mxu0 0.0
    %337 = vmatprep.subr.mxu0 0.0
    %338 = vmatpush2.msra.mxu0 0.0
    %339 = vmatprep.subr.mxu0 0.0
    %340 = vmatpush2.msra.mxu0 0.0
    %341 = vmatprep.subr.mxu0 0.0
    %342 = vmatpush2.msra.mxu0 0.0
    %343 = vmatprep.subr.mxu0 0.0
    %344 = vmatpush2.msra.mxu0 0.0
    %345 = vmatprep.subr.mxu0 0.0
    %346 = vmatpush2.msra.mxu0 0.0
    %347 = vmatprep.subr.mxu0 0.0
    %348 = vmatpush2.msra.mxu0 0.0
    %349 = vmatprep.subr.mxu0 0.0
    %350 = vmatpush2.msra.mxu0 0.0
    %351 = vmatprep.subr.mxu0 0.0
    %352 = vmatpush2.msra.mxu0 0.0
    %353 = vmatprep.subr.mxu0 0.0
    %354 = vmatpush2.msra.mxu0 0.0
    %355 = vmatprep.subr.mxu0 0.0
    %356 = vmatpush2.msra.mxu0 0.0
    %357 = vmatprep.mubr.f32.mxu0 0.0
    %v358 = vand.u32 %v289, 4294901760
    %v359 = vsub.f32 %v289, %v358
    %v360 = vand.u32 %v359, 4294901760
    %v361 = vsub.f32 %v359, %v360
    %v362 = vand.u32 %v361, 4294901760
    %363 = vmatmul.mubr.f32.gmra.mxu0 %v362
    %v364 = vpop.f32.mrf.mxu0
    %v365 = vadd.f32 0.0, %v364
    %v366 = vpop.f32.mrf.mxu0
    %367 = vdwg.mxu0
    %368 = vmatprep.subr.mxu0 0.0
    %369 = vmatpush1.msra.mxu0 0.0
    %370 = vmatprep.subr.mxu0 0.0
    %371 = vmatpush1.msra.mxu0 0.0
    %372 = vmatprep.subr.mxu0 0.0
    %373 = vmatpush1.msra.mxu0 0.0
    %374 = vmatprep.subr.mxu0 0.0
    %375 = vmatpush1.msra.mxu0 0.0
    %376 = vmatprep.subr.mxu0 0.0
    %377 = vmatpush1.msra.mxu0 0.0
    %378 = vmatprep.subr.mxu0 0.0
    %379 = vmatpush1.msra.mxu0 0.0
    %380 = vmatprep.subr.mxu0 0.0
    %381 = vmatpush1.msra.mxu0 0.0
    %382 = vmatprep.subr.mxu0 0.0
    %383 = vmatpush1.msra.mxu0 0.0
    %384 = vmatprep.subr.mxu0 0.0
    %385 = vmatpush1.msra.mxu0 0.0
    %386 = vmatprep.subr.mxu0 0.0
    %387 = vmatpush1.msra.mxu0 0.0
    %388 = vmatprep.subr.mxu0 0.0
    %389 = vmatpush1.msra.mxu0 0.0
    %390 = vmatprep.subr.mxu0 0.0
    %391 = vmatpush1.msra.mxu0 0.0
    %392 = vmatprep.subr.mxu0 0.0
    %393 = vmatpush1.msra.mxu0 0.0
    %394 = vmatprep.subr.mxu0 0.0
    %395 = vmatpush1.msra.mxu0 0.0
    %396 = vmatprep.subr.mxu0 0.0
    %v397 = vand.u32 %v286, 4294901760
    %v398 = vsub.f32 %v286, %v397
    %v399 = vand.u32 %v398, 4294901760
    %v400 = vsub.f32 %v398, %v399
    %v401 = vand.u32 %v400, 4294901760
    %402 = vmatpush1.msra.mxu0 %v401
    %403 = vmatprep.subr.mxu0 0.0
    %v404 = vand.u32 %v285, 4294901760
    %v405 = vsub.f32 %v285, %v404
    %v406 = vand.u32 %v405, 4294901760
    %v407 = vsub.f32 %v405, %v406
    %v408 = vand.u32 %v407, 4294901760
    %409 = vmatpush1.msra.mxu0 %v408
    %410 = vmatprep.subr.mxu0 0.0
    %411 = vmatpush2.msra.mxu0 0.0
    %412 = vmatprep.subr.mxu0 0.0
    %413 = vmatpush2.msra.mxu0 0.0
    %414 = vmatprep.subr.mxu0 0.0
    %415 = vmatpush2.msra.mxu0 0.0
    %416 = vmatprep.subr.mxu0 0.0
    %417 = vmatpush2.msra.mxu0 0.0
    %418 = vmatprep.subr.mxu0 0.0
    %419 = vmatpush2.msra.mxu0 0.0
    %420 = vmatprep.subr.mxu0 0.0
    %421 = vmatpush2.msra.mxu0 0.0
    %422 = vmatprep.subr.mxu0 0.0
    %423 = vmatpush2.msra.mxu0 0.0
    %424 = vmatprep.subr.mxu0 0.0
    %425 = vmatpush2.msra.mxu0 0.0
    %426 = vmatprep.subr.mxu0 0.0
    %427 = vmatpush2.msra.mxu0 0.0
    %428 = vmatprep.subr.mxu0 0.0
    %429 = vmatpush2.msra.mxu0 0.0
    %430 = vmatprep.subr.mxu0 0.0
    %431 = vmatpush2.msra.mxu0 0.0
    %432 = vmatprep.subr.mxu0 0.0
    %433 = vmatpush2.msra.mxu0 0.0
    %434 = vmatprep.subr.mxu0 0.0
    %435 = vmatpush2.msra.mxu0 0.0
    %436 = vmatprep.subr.mxu0 0.0
    %437 = vmatpush2.msra.mxu0 0.0
    %438 = vmatprep.subr.mxu0 0.0
    %439 = vmatpush2.msra.mxu0 0.0
    %440 = vmatprep.subr.mxu0 0.0
    %441 = vmatpush2.msra.mxu0 0.0
    %442 = vmatprep.mubr.f32.mxu0 0.0
    %v443 = vand.u32 %v289, 4294901760
    %444 = vmatmul.mubr.f32.gmra.mxu0 %v443
    %v445 = vpop.f32.mrf.mxu0
    %v446 = vadd.f32 %v365, %v445
    %v447 = vpop.f32.mrf.mxu0
    %448 = vdwg.mxu0
    %449 = vmatprep.subr.mxu0 0.0
    %450 = vmatpush1.msra.mxu0 0.0
    %451 = vmatprep.subr.mxu0 0.0
    %452 = vmatpush1.msra.mxu0 0.0
    %453 = vmatprep.subr.mxu0 0.0
    %454 = vmatpush1.msra.mxu0 0.0
    %455 = vmatprep.subr.mxu0 0.0
    %456 = vmatpush1.msra.mxu0 0.0
    %457 = vmatprep.subr.mxu0 0.0
    %458 = vmatpush1.msra.mxu0 0.0
    %459 = vmatprep.subr.mxu0 0.0
    %460 = vmatpush1.msra.mxu0 0.0
    %461 = vmatprep.subr.mxu0 0.0
    %462 = vmatpush1.msra.mxu0 0.0
    %463 = vmatprep.subr.mxu0 0.0
    %464 = vmatpush1.msra.mxu0 0.0
    %465 = vmatprep.subr.mxu0 0.0
    %466 = vmatpush1.msra.mxu0 0.0
    %467 = vmatprep.subr.mxu0 0.0
    %468 = vmatpush1.msra.mxu0 0.0
    %469 = vmatprep.subr.mxu0 0.0
    %470 = vmatpush1.msra.mxu0 0.0
    %471 = vmatprep.subr.mxu0 0.0
    %472 = vmatpush1.msra.mxu0 0.0
    %473 = vmatprep.subr.mxu0 0.0
    %474 = vmatpush1.msra.mxu0 0.0
    %475 = vmatprep.subr.mxu0 0.0
    %476 = vmatpush1.msra.mxu0 0.0
    %477 = vmatprep.subr.mxu0 0.0
    %v478 = vand.u32 %v286, 4294901760
    %v479 = vsub.f32 %v286, %v478
    %480 = vmatpush1.msra.mxu0 %v479
    %481 = vmatprep.subr.mxu0 0.0
    %v482 = vand.u32 %v285, 4294901760
    %v483 = vsub.f32 %v285, %v482
    %484 = vmatpush1.msra.mxu0 %v483
    %485 = vmatprep.subr.mxu0 0.0
    %486 = vmatpush2.msra.mxu0 0.0
    %487 = vmatprep.subr.mxu0 0.0
    %488 = vmatpush2.msra.mxu0 0.0
    %489 = vmatprep.subr.mxu0 0.0
    %490 = vmatpush2.msra.mxu0 0.0
    %491 = vmatprep.subr.mxu0 0.0
    %492 = vmatpush2.msra.mxu0 0.0
    %493 = vmatprep.subr.mxu0 0.0
    %494 = vmatpush2.msra.mxu0 0.0
    %495 = vmatprep.subr.mxu0 0.0
    %496 = vmatpush2.msra.mxu0 0.0
    %497 = vmatprep.subr.mxu0 0.0
    %498 = vmatpush2.msra.mxu0 0.0
    %499 = vmatprep.subr.mxu0 0.0
    %500 = vmatpush2.msra.mxu0 0.0
    %501 = vmatprep.subr.mxu0 0.0
    %502 = vmatpush2.msra.mxu0 0.0
    %503 = vmatprep.subr.mxu0 0.0
    %504 = vmatpush2.msra.mxu0 0.0
    %505 = vmatprep.subr.mxu0 0.0
    %506 = vmatpush2.msra.mxu0 0.0
    %507 = vmatprep.subr.mxu0 0.0
    %508 = vmatpush2.msra.mxu0 0.0
    %509 = vmatprep.subr.mxu0 0.0
    %510 = vmatpush2.msra.mxu0 0.0
    %511 = vmatprep.subr.mxu0 0.0
    %512 = vmatpush2.msra.mxu0 0.0
    %513 = vmatprep.subr.mxu0 0.0
    %514 = vmatpush2.msra.mxu0 0.0
    %515 = vmatprep.subr.mxu0 0.0
    %516 = vmatpush2.msra.mxu0 0.0
    %517 = vmatprep.mubr.f32.mxu0 0.0
    %v518 = vand.u32 %v289, 4294901760
    %v519 = vsub.f32 %v289, %v518
    %520 = vmatmul.mubr.f32.gmra.mxu0 %v519
    %v521 = vpop.f32.mrf.mxu0
    %v522 = vadd.f32 %v446, %v521
    %v523 = vpop.f32.mrf.mxu0
    %524 = vdwg.mxu0
    %525 = vmatprep.subr.mxu0 0.0
    %526 = vmatpush1.msra.mxu0 0.0
    %527 = vmatprep.subr.mxu0 0.0
    %528 = vmatpush1.msra.mxu0 0.0
    %529 = vmatprep.subr.mxu0 0.0
    %530 = vmatpush1.msra.mxu0 0.0
    %531 = vmatprep.subr.mxu0 0.0
    %532 = vmatpush1.msra.mxu0 0.0
    %533 = vmatprep.subr.mxu0 0.0
    %534 = vmatpush1.msra.mxu0 0.0
    %535 = vmatprep.subr.mxu0 0.0
    %536 = vmatpush1.msra.mxu0 0.0
    %537 = vmatprep.subr.mxu0 0.0
    %538 = vmatpush1.msra.mxu0 0.0
    %539 = vmatprep.subr.mxu0 0.0
    %540 = vmatpush1.msra.mxu0 0.0
    %541 = vmatprep.subr.mxu0 0.0
    %542 = vmatpush1.msra.mxu0 0.0
    %543 = vmatprep.subr.mxu0 0.0
    %544 = vmatpush1.msra.mxu0 0.0
    %545 = vmatprep.subr.mxu0 0.0
    %546 = vmatpush1.msra.mxu0 0.0
    %547 = vmatprep.subr.mxu0 0.0
    %548 = vmatpush1.msra.mxu0 0.0
    %549 = vmatprep.subr.mxu0 0.0
    %550 = vmatpush1.msra.mxu0 0.0
    %551 = vmatprep.subr.mxu0 0.0
    %552 = vmatpush1.msra.mxu0 0.0
    %553 = vmatprep.subr.mxu0 0.0
    %v554 = vand.u32 %v286, 4294901760
    %555 = vmatpush1.msra.mxu0 %v554
    %556 = vmatprep.subr.mxu0 0.0
    %v557 = vand.u32 %v285, 4294901760
    %558 = vmatpush1.msra.mxu0 %v557
    %559 = vmatprep.subr.mxu0 0.0
    %560 = vmatpush2.msra.mxu0 0.0
    %561 = vmatprep.subr.mxu0 0.0
    %562 = vmatpush2.msra.mxu0 0.0
    %563 = vmatprep.subr.mxu0 0.0
    %564 = vmatpush2.msra.mxu0 0.0
    %565 = vmatprep.subr.mxu0 0.0
    %566 = vmatpush2.msra.mxu0 0.0
    %567 = vmatprep.subr.mxu0 0.0
    %568 = vmatpush2.msra.mxu0 0.0
    %569 = vmatprep.subr.mxu0 0.0
    %570 = vmatpush2.msra.mxu0 0.0
    %571 = vmatprep.subr.mxu0 0.0
    %572 = vmatpush2.msra.mxu0 0.0
    %573 = vmatprep.subr.mxu0 0.0
    %574 = vmatpush2.msra.mxu0 0.0
    %575 = vmatprep.subr.mxu0 0.0
    %576 = vmatpush2.msra.mxu0 0.0
    %577 = vmatprep.subr.mxu0 0.0
    %578 = vmatpush2.msra.mxu0 0.0
    %579 = vmatprep.subr.mxu0 0.0
    %580 = vmatpush2.msra.mxu0 0.0
    %581 = vmatprep.subr.mxu0 0.0
    %582 = vmatpush2.msra.mxu0 0.0
    %583 = vmatprep.subr.mxu0 0.0
    %584 = vmatpush2.msra.mxu0 0.0
    %585 = vmatprep.subr.mxu0 0.0
    %586 = vmatpush2.msra.mxu0 0.0
    %587 = vmatprep.subr.mxu0 0.0
    %588 = vmatpush2.msra.mxu0 0.0
    %589 = vmatprep.subr.mxu0 0.0
    %590 = vmatpush2.msra.mxu0 0.0
    %591 = vmatprep.mubr.f32.mxu0 0.0
    %v592 = vand.u32 %v289, 4294901760
    %v593 = vsub.f32 %v289, %v592
    %v594 = vand.u32 %v593, 4294901760
    %595 = vmatmul.mubr.f32.gmra.mxu0 %v594
    %v596 = vpop.f32.mrf.mxu0
    %v597 = vadd.f32 %v522, %v596
    %v598 = vpop.f32.mrf.mxu0
    %599 = vdwg.mxu0
    %600 = vmatprep.subr.mxu0 0.0
    %601 = vmatpush1.msra.mxu0 0.0
    %602 = vmatprep.subr.mxu0 0.0
    %603 = vmatpush1.msra.mxu0 0.0
    %604 = vmatprep.subr.mxu0 0.0
    %605 = vmatpush1.msra.mxu0 0.0
    %606 = vmatprep.subr.mxu0 0.0
    %607 = vmatpush1.msra.mxu0 0.0
    %608 = vmatprep.subr.mxu0 0.0
    %609 = vmatpush1.msra.mxu0 0.0
    %610 = vmatprep.subr.mxu0 0.0
    %611 = vmatpush1.msra.mxu0 0.0
    %612 = vmatprep.subr.mxu0 0.0
    %613 = vmatpush1.msra.mxu0 0.0
    %614 = vmatprep.subr.mxu0 0.0
    %615 = vmatpush1.msra.mxu0 0.0
    %616 = vmatprep.subr.mxu0 0.0
    %617 = vmatpush1.msra.mxu0 0.0
    %618 = vmatprep.subr.mxu0 0.0
    %619 = vmatpush1.msra.mxu0 0.0
    %620 = vmatprep.subr.mxu0 0.0
    %621 = vmatpush1.msra.mxu0 0.0
    %622 = vmatprep.subr.mxu0 0.0
    %623 = vmatpush1.msra.mxu0 0.0
    %624 = vmatprep.subr.mxu0 0.0
    %625 = vmatpush1.msra.mxu0 0.0
    %626 = vmatprep.subr.mxu0 0.0
    %627 = vmatpush1.msra.mxu0 0.0
    %628 = vmatprep.subr.mxu0 0.0
    %v629 = vand.u32 %v286, 4294901760
    %v630 = vsub.f32 %v286, %v629
    %v631 = vand.u32 %v630, 4294901760
    %632 = vmatpush1.msra.mxu0 %v631
    %633 = vmatprep.subr.mxu0 0.0
    %v634 = vand.u32 %v285, 4294901760
    %v635 = vsub.f32 %v285, %v634
    %v636 = vand.u32 %v635, 4294901760
    %637 = vmatpush1.msra.mxu0 %v636
    %638 = vmatprep.subr.mxu0 0.0
    %639 = vmatpush2.msra.mxu0 0.0
    %640 = vmatprep.subr.mxu0 0.0
    %641 = vmatpush2.msra.mxu0 0.0
    %642 = vmatprep.subr.mxu0 0.0
    %643 = vmatpush2.msra.mxu0 0.0
    %644 = vmatprep.subr.mxu0 0.0
    %645 = vmatpush2.msra.mxu0 0.0
    %646 = vmatprep.subr.mxu0 0.0
    %647 = vmatpush2.msra.mxu0 0.0
    %648 = vmatprep.subr.mxu0 0.0
    %649 = vmatpush2.msra.mxu0 0.0
    %650 = vmatprep.subr.mxu0 0.0
    %651 = vmatpush2.msra.mxu0 0.0
    %652 = vmatprep.subr.mxu0 0.0
    %653 = vmatpush2.msra.mxu0 0.0
    %654 = vmatprep.subr.mxu0 0.0
    %655 = vmatpush2.msra.mxu0 0.0
    %656 = vmatprep.subr.mxu0 0.0
    %657 = vmatpush2.msra.mxu0 0.0
    %658 = vmatprep.subr.mxu0 0.0
    %659 = vmatpush2.msra.mxu0 0.0
    %660 = vmatprep.subr.mxu0 0.0
    %661 = vmatpush2.msra.mxu0 0.0
    %662 = vmatprep.subr.mxu0 0.0
    %663 = vmatpush2.msra.mxu0 0.0
    %664 = vmatprep.subr.mxu0 0.0
    %665 = vmatpush2.msra.mxu0 0.0
    %666 = vmatprep.subr.mxu0 0.0
    %667 = vmatpush2.msra.mxu0 0.0
    %668 = vmatprep.subr.mxu0 0.0
    %669 = vmatpush2.msra.mxu0 0.0
    %670 = vmatprep.mubr.f32.mxu0 0.0
    %v671 = vand.u32 %v289, 4294901760
    %672 = vmatmul.mubr.f32.gmra.mxu0 %v671
    %v673 = vpop.f32.mrf.mxu0
    %v674 = vadd.f32 %v597, %v673
    %v675 = vpop.f32.mrf.mxu0
    %676 = vdwg.mxu0
    %677 = vmatprep.subr.mxu0 0.0
    %678 = vmatpush1.msra.mxu0 0.0
    %679 = vmatprep.subr.mxu0 0.0
    %680 = vmatpush1.msra.mxu0 0.0
    %681 = vmatprep.subr.mxu0 0.0
    %682 = vmatpush1.msra.mxu0 0.0
    %683 = vmatprep.subr.mxu0 0.0
    %684 = vmatpush1.msra.mxu0 0.0
    %685 = vmatprep.subr.mxu0 0.0
    %686 = vmatpush1.msra.mxu0 0.0
    %687 = vmatprep.subr.mxu0 0.0
    %688 = vmatpush1.msra.mxu0 0.0
    %689 = vmatprep.subr.mxu0 0.0
    %690 = vmatpush1.msra.mxu0 0.0
    %691 = vmatprep.subr.mxu0 0.0
    %692 = vmatpush1.msra.mxu0 0.0
    %693 = vmatprep.subr.mxu0 0.0
    %694 = vmatpush1.msra.mxu0 0.0
    %695 = vmatprep.subr.mxu0 0.0
    %696 = vmatpush1.msra.mxu0 0.0
    %697 = vmatprep.subr.mxu0 0.0
    %698 = vmatpush1.msra.mxu0 0.0
    %699 = vmatprep.subr.mxu0 0.0
    %700 = vmatpush1.msra.mxu0 0.0
    %701 = vmatprep.subr.mxu0 0.0
    %702 = vmatpush1.msra.mxu0 0.0
    %703 = vmatprep.subr.mxu0 0.0
    %704 = vmatpush1.msra.mxu0 0.0
    %705 = vmatprep.subr.mxu0 0.0
    %v706 = vand.u32 %v286, 4294901760
    %707 = vmatpush1.msra.mxu0 %v706
    %708 = vmatprep.subr.mxu0 0.0
    %v709 = vand.u32 %v285, 4294901760
    %710 = vmatpush1.msra.mxu0 %v709
    %711 = vmatprep.subr.mxu0 0.0
    %712 = vmatpush2.msra.mxu0 0.0
    %713 = vmatprep.subr.mxu0 0.0
    %714 = vmatpush2.msra.mxu0 0.0
    %715 = vmatprep.subr.mxu0 0.0
    %716 = vmatpush2.msra.mxu0 0.0
    %717 = vmatprep.subr.mxu0 0.0
    %718 = vmatpush2.msra.mxu0 0.0
    %719 = vmatprep.subr.mxu0 0.0
    %720 = vmatpush2.msra.mxu0 0.0
    %721 = vmatprep.subr.mxu0 0.0
    %722 = vmatpush2.msra.mxu0 0.0
    %723 = vmatprep.subr.mxu0 0.0
    %724 = vmatpush2.msra.mxu0 0.0
    %725 = vmatprep.subr.mxu0 0.0
    %726 = vmatpush2.msra.mxu0 0.0
    %727 = vmatprep.subr.mxu0 0.0
    %728 = vmatpush2.msra.mxu0 0.0
    %729 = vmatprep.subr.mxu0 0.0
    %730 = vmatpush2.msra.mxu0 0.0
    %731 = vmatprep.subr.mxu0 0.0
    %732 = vmatpush2.msra.mxu0 0.0
    %733 = vmatprep.subr.mxu0 0.0
    %734 = vmatpush2.msra.mxu0 0.0
    %735 = vmatprep.subr.mxu0 0.0
    %736 = vmatpush2.msra.mxu0 0.0
    %737 = vmatprep.subr.mxu0 0.0
    %738 = vmatpush2.msra.mxu0 0.0
    %739 = vmatprep.subr.mxu0 0.0
    %740 = vmatpush2.msra.mxu0 0.0
    %741 = vmatprep.subr.mxu0 0.0
    %742 = vmatpush2.msra.mxu0 0.0
    %743 = vmatprep.mubr.f32.mxu0 0.0
    %v744 = vand.u32 %v289, 4294901760
    %745 = vmatmul.mubr.f32.gmra.mxu0 %v744
    %v746 = vpop.f32.mrf.mxu0
    %v747 = vadd.f32 %v674, %v746
    %v748 = vpop.f32.mrf.mxu0
    %749 = vdwg.mxu0
    %v751 = vsel %vm287, %v179, 0
    %753 = vmatprep.subr.mxu0 0.0
    %754 = vmatpush1.msra.mxu0 0.0
    %755 = vmatprep.subr.mxu0 0.0
    %756 = vmatpush1.msra.mxu0 0.0
    %757 = vmatprep.subr.mxu0 0.0
    %758 = vmatpush1.msra.mxu0 0.0
    %759 = vmatprep.subr.mxu0 0.0
    %760 = vmatpush1.msra.mxu0 0.0
    %761 = vmatprep.subr.mxu0 0.0
    %762 = vmatpush1.msra.mxu0 0.0
    %763 = vmatprep.subr.mxu0 0.0
    %764 = vmatpush1.msra.mxu0 0.0
    %765 = vmatprep.subr.mxu0 0.0
    %766 = vmatpush1.msra.mxu0 0.0
    %767 = vmatprep.subr.mxu0 0.0
    %768 = vmatpush1.msra.mxu0 0.0
    %769 = vmatprep.subr.mxu0 0.0
    %770 = vmatpush1.msra.mxu0 0.0
    %771 = vmatprep.subr.mxu0 0.0
    %772 = vmatpush1.msra.mxu0 0.0
    %773 = vmatprep.subr.mxu0 0.0
    %774 = vmatpush1.msra.mxu0 0.0
    %775 = vmatprep.subr.mxu0 0.0
    %776 = vmatpush1.msra.mxu0 0.0
    %777 = vmatprep.subr.mxu0 0.0
    %778 = vmatpush1.msra.mxu0 0.0
    %779 = vmatprep.subr.mxu0 0.0
    %780 = vmatpush1.msra.mxu0 0.0
    %781 = vmatprep.subr.mxu0 0.0
    %v782 = vand.u32 %v181, 4294901760
    %783 = vmatpush1.msra.mxu0 %v782
    %784 = vmatprep.subr.mxu0 0.0
    %v785 = vand.u32 %v180, 4294901760
    %786 = vmatpush1.msra.mxu0 %v785
    %787 = vmatprep.subr.mxu0 0.0
    %788 = vmatpush2.msra.mxu0 0.0
    %789 = vmatprep.subr.mxu0 0.0
    %790 = vmatpush2.msra.mxu0 0.0
    %791 = vmatprep.subr.mxu0 0.0
    %792 = vmatpush2.msra.mxu0 0.0
    %793 = vmatprep.subr.mxu0 0.0
    %794 = vmatpush2.msra.mxu0 0.0
    %795 = vmatprep.subr.mxu0 0.0
    %796 = vmatpush2.msra.mxu0 0.0
    %797 = vmatprep.subr.mxu0 0.0
    %798 = vmatpush2.msra.mxu0 0.0
    %799 = vmatprep.subr.mxu0 0.0
    %800 = vmatpush2.msra.mxu0 0.0
    %801 = vmatprep.subr.mxu0 0.0
    %802 = vmatpush2.msra.mxu0 0.0
    %803 = vmatprep.subr.mxu0 0.0
    %804 = vmatpush2.msra.mxu0 0.0
    %805 = vmatprep.subr.mxu0 0.0
    %806 = vmatpush2.msra.mxu0 0.0
    %807 = vmatprep.subr.mxu0 0.0
    %808 = vmatpush2.msra.mxu0 0.0
    %809 = vmatprep.subr.mxu0 0.0
    %810 = vmatpush2.msra.mxu0 0.0
    %811 = vmatprep.subr.mxu0 0.0
    %812 = vmatpush2.msra.mxu0 0.0
    %813 = vmatprep.subr.mxu0 0.0
    %814 = vmatpush2.msra.mxu0 0.0
    %815 = vmatprep.subr.mxu0 0.0
    %816 = vmatpush2.msra.mxu0 0.0
    %817 = vmatprep.subr.mxu0 0.0
    %818 = vmatpush2.msra.mxu0 0.0
    %819 = vmatprep.mubr.f32.mxu0 0.0
    %v820 = vand.u32 %v751, 4294901760
    %v821 = vsub.f32 %v751, %v820
    %v822 = vand.u32 %v821, 4294901760
    %v823 = vsub.f32 %v821, %v822
    %v824 = vand.u32 %v823, 4294901760
    %825 = vmatmul.mubr.f32.gmra.mxu0 %v824
    %v826 = vpop.f32.mrf.mxu0
    %v827 = vadd.f32 %v747, %v826
    %v828 = vpop.f32.mrf.mxu0
    %829 = vdwg.mxu0
    %830 = vmatprep.subr.mxu0 0.0
    %831 = vmatpush1.msra.mxu0 0.0
    %832 = vmatprep.subr.mxu0 0.0
    %833 = vmatpush1.msra.mxu0 0.0
    %834 = vmatprep.subr.mxu0 0.0
    %835 = vmatpush1.msra.mxu0 0.0
    %836 = vmatprep.subr.mxu0 0.0
    %837 = vmatpush1.msra.mxu0 0.0
    %838 = vmatprep.subr.mxu0 0.0
    %839 = vmatpush1.msra.mxu0 0.0
    %840 = vmatprep.subr.mxu0 0.0
    %841 = vmatpush1.msra.mxu0 0.0
    %842 = vmatprep.subr.mxu0 0.0
    %843 = vmatpush1.msra.mxu0 0.0
    %844 = vmatprep.subr.mxu0 0.0
    %845 = vmatpush1.msra.mxu0 0.0
    %846 = vmatprep.subr.mxu0 0.0
    %847 = vmatpush1.msra.mxu0 0.0
    %848 = vmatprep.subr.mxu0 0.0
    %849 = vmatpush1.msra.mxu0 0.0
    %850 = vmatprep.subr.mxu0 0.0
    %851 = vmatpush1.msra.mxu0 0.0
    %852 = vmatprep.subr.mxu0 0.0
    %853 = vmatpush1.msra.mxu0 0.0
    %854 = vmatprep.subr.mxu0 0.0
    %855 = vmatpush1.msra.mxu0 0.0
    %856 = vmatprep.subr.mxu0 0.0
    %857 = vmatpush1.msra.mxu0 0.0
    %858 = vmatprep.subr.mxu0 0.0
    %v859 = vand.u32 %v181, 4294901760
    %v860 = vsub.f32 %v181, %v859
    %v861 = vand.u32 %v860, 4294901760
    %v862 = vsub.f32 %v860, %v861
    %v863 = vand.u32 %v862, 4294901760
    %864 = vmatpush1.msra.mxu0 %v863
    %865 = vmatprep.subr.mxu0 0.0
    %v866 = vand.u32 %v180, 4294901760
    %v867 = vsub.f32 %v180, %v866
    %v868 = vand.u32 %v867, 4294901760
    %v869 = vsub.f32 %v867, %v868
    %v870 = vand.u32 %v869, 4294901760
    %871 = vmatpush1.msra.mxu0 %v870
    %872 = vmatprep.subr.mxu0 0.0
    %873 = vmatpush2.msra.mxu0 0.0
    %874 = vmatprep.subr.mxu0 0.0
    %875 = vmatpush2.msra.mxu0 0.0
    %876 = vmatprep.subr.mxu0 0.0
    %877 = vmatpush2.msra.mxu0 0.0
    %878 = vmatprep.subr.mxu0 0.0
    %879 = vmatpush2.msra.mxu0 0.0
    %880 = vmatprep.subr.mxu0 0.0
    %881 = vmatpush2.msra.mxu0 0.0
    %882 = vmatprep.subr.mxu0 0.0
    %883 = vmatpush2.msra.mxu0 0.0
    %884 = vmatprep.subr.mxu0 0.0
    %885 = vmatpush2.msra.mxu0 0.0
    %886 = vmatprep.subr.mxu0 0.0
    %887 = vmatpush2.msra.mxu0 0.0
    %888 = vmatprep.subr.mxu0 0.0
    %889 = vmatpush2.msra.mxu0 0.0
    %890 = vmatprep.subr.mxu0 0.0
    %891 = vmatpush2.msra.mxu0 0.0
    %892 = vmatprep.subr.mxu0 0.0
    %893 = vmatpush2.msra.mxu0 0.0
    %894 = vmatprep.subr.mxu0 0.0
    %895 = vmatpush2.msra.mxu0 0.0
    %896 = vmatprep.subr.mxu0 0.0
    %897 = vmatpush2.msra.mxu0 0.0
    %898 = vmatprep.subr.mxu0 0.0
    %899 = vmatpush2.msra.mxu0 0.0
    %900 = vmatprep.subr.mxu0 0.0
    %901 = vmatpush2.msra.mxu0 0.0
    %902 = vmatprep.subr.mxu0 0.0
    %903 = vmatpush2.msra.mxu0 0.0
    %904 = vmatprep.mubr.f32.mxu0 0.0
    %v905 = vand.u32 %v751, 4294901760
    %906 = vmatmul.mubr.f32.gmra.mxu0 %v905
    %v907 = vpop.f32.mrf.mxu0
    %v908 = vadd.f32 %v827, %v907
    %v909 = vpop.f32.mrf.mxu0
    %910 = vdwg.mxu0
    %911 = vmatprep.subr.mxu0 0.0
    %912 = vmatpush1.msra.mxu0 0.0
    %913 = vmatprep.subr.mxu0 0.0
    %914 = vmatpush1.msra.mxu0 0.0
    %915 = vmatprep.subr.mxu0 0.0
    %916 = vmatpush1.msra.mxu0 0.0
    %917 = vmatprep.subr.mxu0 0.0
    %918 = vmatpush1.msra.mxu0 0.0
    %919 = vmatprep.subr.mxu0 0.0
    %920 = vmatpush1.msra.mxu0 0.0
    %921 = vmatprep.subr.mxu0 0.0
    %922 = vmatpush1.msra.mxu0 0.0
    %923 = vmatprep.subr.mxu0 0.0
    %924 = vmatpush1.msra.mxu0 0.0
    %925 = vmatprep.subr.mxu0 0.0
    %926 = vmatpush1.msra.mxu0 0.0
    %927 = vmatprep.subr.mxu0 0.0
    %928 = vmatpush1.msra.mxu0 0.0
    %929 = vmatprep.subr.mxu0 0.0
    %930 = vmatpush1.msra.mxu0 0.0
    %931 = vmatprep.subr.mxu0 0.0
    %932 = vmatpush1.msra.mxu0 0.0
    %933 = vmatprep.subr.mxu0 0.0
    %934 = vmatpush1.msra.mxu0 0.0
    %935 = vmatprep.subr.mxu0 0.0
    %936 = vmatpush1.msra.mxu0 0.0
    %937 = vmatprep.subr.mxu0 0.0
    %938 = vmatpush1.msra.mxu0 0.0
    %939 = vmatprep.subr.mxu0 0.0
    %v940 = vand.u32 %v181, 4294901760
    %v941 = vsub.f32 %v181, %v940
    %942 = vmatpush1.msra.mxu0 %v941
    %943 = vmatprep.subr.mxu0 0.0
    %v944 = vand.u32 %v180, 4294901760
    %v945 = vsub.f32 %v180, %v944
    %946 = vmatpush1.msra.mxu0 %v945
    %947 = vmatprep.subr.mxu0 0.0
    %948 = vmatpush2.msra.mxu0 0.0
    %949 = vmatprep.subr.mxu0 0.0
    %950 = vmatpush2.msra.mxu0 0.0
    %951 = vmatprep.subr.mxu0 0.0
    %952 = vmatpush2.msra.mxu0 0.0
    %953 = vmatprep.subr.mxu0 0.0
    %954 = vmatpush2.msra.mxu0 0.0
    %955 = vmatprep.subr.mxu0 0.0
    %956 = vmatpush2.msra.mxu0 0.0
    %957 = vmatprep.subr.mxu0 0.0
    %958 = vmatpush2.msra.mxu0 0.0
    %959 = vmatprep.subr.mxu0 0.0
    %960 = vmatpush2.msra.mxu0 0.0
    %961 = vmatprep.subr.mxu0 0.0
    %962 = vmatpush2.msra.mxu0 0.0
    %963 = vmatprep.subr.mxu0 0.0
    %964 = vmatpush2.msra.mxu0 0.0
    %965 = vmatprep.subr.mxu0 0.0
    %966 = vmatpush2.msra.mxu0 0.0
    %967 = vmatprep.subr.mxu0 0.0
    %968 = vmatpush2.msra.mxu0 0.0
    %969 = vmatprep.subr.mxu0 0.0
    %970 = vmatpush2.msra.mxu0 0.0
    %971 = vmatprep.subr.mxu0 0.0
    %972 = vmatpush2.msra.mxu0 0.0
    %973 = vmatprep.subr.mxu0 0.0
    %974 = vmatpush2.msra.mxu0 0.0
    %975 = vmatprep.subr.mxu0 0.0
    %976 = vmatpush2.msra.mxu0 0.0
    %977 = vmatprep.subr.mxu0 0.0
    %978 = vmatpush2.msra.mxu0 0.0
    %979 = vmatprep.mubr.f32.mxu0 0.0
    %v980 = vand.u32 %v751, 4294901760
    %v981 = vsub.f32 %v751, %v980
    %982 = vmatmul.mubr.f32.gmra.mxu0 %v981
    %v983 = vpop.f32.mrf.mxu0
    %v984 = vadd.f32 %v908, %v983
    %v985 = vpop.f32.mrf.mxu0
    %986 = vdwg.mxu0
    %987 = vmatprep.subr.mxu0 0.0
    %988 = vmatpush1.msra.mxu0 0.0
    %989 = vmatprep.subr.mxu0 0.0
    %990 = vmatpush1.msra.mxu0 0.0
    %991 = vmatprep.subr.mxu0 0.0
    %992 = vmatpush1.msra.mxu0 0.0
    %993 = vmatprep.subr.mxu0 0.0
    %994 = vmatpush1.msra.mxu0 0.0
    %995 = vmatprep.subr.mxu0 0.0
    %996 = vmatpush1.msra.mxu0 0.0
    %997 = vmatprep.subr.mxu0 0.0
    %998 = vmatpush1.msra.mxu0 0.0
    %999 = vmatprep.subr.mxu0 0.0
    %1000 = vmatpush1.msra.mxu0 0.0
    %1001 = vmatprep.subr.mxu0 0.0
    %1002 = vmatpush1.msra.mxu0 0.0
    %1003 = vmatprep.subr.mxu0 0.0
    %1004 = vmatpush1.msra.mxu0 0.0
    %1005 = vmatprep.subr.mxu0 0.0
    %1006 = vmatpush1.msra.mxu0 0.0
    %1007 = vmatprep.subr.mxu0 0.0
    %1008 = vmatpush1.msra.mxu0 0.0
    %1009 = vmatprep.subr.mxu0 0.0
    %1010 = vmatpush1.msra.mxu0 0.0
    %1011 = vmatprep.subr.mxu0 0.0
    %1012 = vmatpush1.msra.mxu0 0.0
    %1013 = vmatprep.subr.mxu0 0.0
    %1014 = vmatpush1.msra.mxu0 0.0
    %1015 = vmatprep.subr.mxu0 0.0
    %v1016 = vand.u32 %v181, 4294901760
    %1017 = vmatpush1.msra.mxu0 %v1016
    %1018 = vmatprep.subr.mxu0 0.0
    %v1019 = vand.u32 %v180, 4294901760
    %1020 = vmatpush1.msra.mxu0 %v1019
    %1021 = vmatprep.subr.mxu0 0.0
    %1022 = vmatpush2.msra.mxu0 0.0
    %1023 = vmatprep.subr.mxu0 0.0
    %1024 = vmatpush2.msra.mxu0 0.0
    %1025 = vmatprep.subr.mxu0 0.0
    %1026 = vmatpush2.msra.mxu0 0.0
    %1027 = vmatprep.subr.mxu0 0.0
    %1028 = vmatpush2.msra.mxu0 0.0
    %1029 = vmatprep.subr.mxu0 0.0
    %1030 = vmatpush2.msra.mxu0 0.0
    %1031 = vmatprep.subr.mxu0 0.0
    %1032 = vmatpush2.msra.mxu0 0.0
    %1033 = vmatprep.subr.mxu0 0.0
    %1034 = vmatpush2.msra.mxu0 0.0
    %1035 = vmatprep.subr.mxu0 0.0
    %1036 = vmatpush2.msra.mxu0 0.0
    %1037 = vmatprep.subr.mxu0 0.0
    %1038 = vmatpush2.msra.mxu0 0.0
    %1039 = vmatprep.subr.mxu0 0.0
    %1040 = vmatpush2.msra.mxu0 0.0
    %1041 = vmatprep.subr.mxu0 0.0
    %1042 = vmatpush2.msra.mxu0 0.0
    %1043 = vmatprep.subr.mxu0 0.0
    %1044 = vmatpush2.msra.mxu0 0.0
    %1045 = vmatprep.subr.mxu0 0.0
    %1046 = vmatpush2.msra.mxu0 0.0
    %1047 = vmatprep.subr.mxu0 0.0
    %1048 = vmatpush2.msra.mxu0 0.0
    %1049 = vmatprep.subr.mxu0 0.0
    %1050 = vmatpush2.msra.mxu0 0.0
    %1051 = vmatprep.subr.mxu0 0.0
    %1052 = vmatpush2.msra.mxu0 0.0
    %1053 = vmatprep.mubr.f32.mxu0 0.0
    %v1054 = vand.u32 %v751, 4294901760
    %v1055 = vsub.f32 %v751, %v1054
    %v1056 = vand.u32 %v1055, 4294901760
    %1057 = vmatmul.mubr.f32.gmra.mxu0 %v1056
    %v1058 = vpop.f32.mrf.mxu0
    %v1059 = vadd.f32 %v984, %v1058
    %v1060 = vpop.f32.mrf.mxu0
    %1061 = vdwg.mxu0
    %1062 = vmatprep.subr.mxu0 0.0
    %1063 = vmatpush1.msra.mxu0 0.0
    %1064 = vmatprep.subr.mxu0 0.0
    %1065 = vmatpush1.msra.mxu0 0.0
    %1066 = vmatprep.subr.mxu0 0.0
    %1067 = vmatpush1.msra.mxu0 0.0
    %1068 = vmatprep.subr.mxu0 0.0
    %1069 = vmatpush1.msra.mxu0 0.0
    %1070 = vmatprep.subr.mxu0 0.0
    %1071 = vmatpush1.msra.mxu0 0.0
    %1072 = vmatprep.subr.mxu0 0.0
    %1073 = vmatpush1.msra.mxu0 0.0
    %1074 = vmatprep.subr.mxu0 0.0
    %1075 = vmatpush1.msra.mxu0 0.0
    %1076 = vmatprep.subr.mxu0 0.0
    %1077 = vmatpush1.msra.mxu0 0.0
    %1078 = vmatprep.subr.mxu0 0.0
    %1079 = vmatpush1.msra.mxu0 0.0
    %1080 = vmatprep.subr.mxu0 0.0
    %1081 = vmatpush1.msra.mxu0 0.0
    %1082 = vmatprep.subr.mxu0 0.0
    %1083 = vmatpush1.msra.mxu0 0.0
    %1084 = vmatprep.subr.mxu0 0.0
    %1085 = vmatpush1.msra.mxu0 0.0
    %1086 = vmatprep.subr.mxu0 0.0
    %1087 = vmatpush1.msra.mxu0 0.0
    %1088 = vmatprep.subr.mxu0 0.0
    %1089 = vmatpush1.msra.mxu0 0.0
    %1090 = vmatprep.subr.mxu0 0.0
    %v1091 = vand.u32 %v181, 4294901760
    %v1092 = vsub.f32 %v181, %v1091
    %v1093 = vand.u32 %v1092, 4294901760
    %1094 = vmatpush1.msra.mxu0 %v1093
    %1095 = vmatprep.subr.mxu0 0.0
    %v1096 = vand.u32 %v180, 4294901760
    %v1097 = vsub.f32 %v180, %v1096
    %v1098 = vand.u32 %v1097, 4294901760
    %1099 = vmatpush1.msra.mxu0 %v1098
    %1100 = vmatprep.subr.mxu0 0.0
    %1101 = vmatpush2.msra.mxu0 0.0
    %1102 = vmatprep.subr.mxu0 0.0
    %1103 = vmatpush2.msra.mxu0 0.0
    %1104 = vmatprep.subr.mxu0 0.0
    %1105 = vmatpush2.msra.mxu0 0.0
    %1106 = vmatprep.subr.mxu0 0.0
    %1107 = vmatpush2.msra.mxu0 0.0
    %1108 = vmatprep.subr.mxu0 0.0
    %1109 = vmatpush2.msra.mxu0 0.0
    %1110 = vmatprep.subr.mxu0 0.0
    %1111 = vmatpush2.msra.mxu0 0.0
    %1112 = vmatprep.subr.mxu0 0.0
    %1113 = vmatpush2.msra.mxu0 0.0
    %1114 = vmatprep.subr.mxu0 0.0
    %1115 = vmatpush2.msra.mxu0 0.0
    %1116 = vmatprep.subr.mxu0 0.0
    %1117 = vmatpush2.msra.mxu0 0.0
    %1118 = vmatprep.subr.mxu0 0.0
    %1119 = vmatpush2.msra.mxu0 0.0
    %1120 = vmatprep.subr.mxu0 0.0
    %1121 = vmatpush2.msra.mxu0 0.0
    %1122 = vmatprep.subr.mxu0 0.0
    %1123 = vmatpush2.msra.mxu0 0.0
    %1124 = vmatprep.subr.mxu0 0.0
    %1125 = vmatpush2.msra.mxu0 0.0
    %1126 = vmatprep.subr.mxu0 0.0
    %1127 = vmatpush2.msra.mxu0 0.0
    %1128 = vmatprep.subr.mxu0 0.0
    %1129 = vmatpush2.msra.mxu0 0.0
    %1130 = vmatprep.subr.mxu0 0.0
    %1131 = vmatpush2.msra.mxu0 0.0
    %1132 = vmatprep.mubr.f32.mxu0 0.0
    %v1133 = vand.u32 %v751, 4294901760
    %1134 = vmatmul.mubr.f32.gmra.mxu0 %v1133
    %v1135 = vpop.f32.mrf.mxu0
    %v1136 = vadd.f32 %v1059, %v1135
    %v1137 = vpop.f32.mrf.mxu0
    %1138 = vdwg.mxu0
    %1139 = vmatprep.subr.mxu0 0.0
    %1140 = vmatpush1.msra.mxu0 0.0
    %1141 = vmatprep.subr.mxu0 0.0
    %1142 = vmatpush1.msra.mxu0 0.0
    %1143 = vmatprep.subr.mxu0 0.0
    %1144 = vmatpush1.msra.mxu0 0.0
    %1145 = vmatprep.subr.mxu0 0.0
    %1146 = vmatpush1.msra.mxu0 0.0
    %1147 = vmatprep.subr.mxu0 0.0
    %1148 = vmatpush1.msra.mxu0 0.0
    %1149 = vmatprep.subr.mxu0 0.0
    %1150 = vmatpush1.msra.mxu0 0.0
    %1151 = vmatprep.subr.mxu0 0.0
    %1152 = vmatpush1.msra.mxu0 0.0
    %1153 = vmatprep.subr.mxu0 0.0
    %1154 = vmatpush1.msra.mxu0 0.0
    %1155 = vmatprep.subr.mxu0 0.0
    %1156 = vmatpush1.msra.mxu0 0.0
    %1157 = vmatprep.subr.mxu0 0.0
    %1158 = vmatpush1.msra.mxu0 0.0
    %1159 = vmatprep.subr.mxu0 0.0
    %1160 = vmatpush1.msra.mxu0 0.0
    %1161 = vmatprep.subr.mxu0 0.0
    %1162 = vmatpush1.msra.mxu0 0.0
    %1163 = vmatprep.subr.mxu0 0.0
    %1164 = vmatpush1.msra.mxu0 0.0
    %1165 = vmatprep.subr.mxu0 0.0
    %1166 = vmatpush1.msra.mxu0 0.0
    %1167 = vmatprep.subr.mxu0 0.0
    %v1168 = vand.u32 %v181, 4294901760
    %1169 = vmatpush1.msra.mxu0 %v1168
    %1170 = vmatprep.subr.mxu0 0.0
    %v1171 = vand.u32 %v180, 4294901760
    %1172 = vmatpush1.msra.mxu0 %v1171
    %1173 = vmatprep.subr.mxu0 0.0
    %1174 = vmatpush2.msra.mxu0 0.0
    %1175 = vmatprep.subr.mxu0 0.0
    %1176 = vmatpush2.msra.mxu0 0.0
    %1177 = vmatprep.subr.mxu0 0.0
    %1178 = vmatpush2.msra.mxu0 0.0
    %1179 = vmatprep.subr.mxu0 0.0
    %1180 = vmatpush2.msra.mxu0 0.0
    %1181 = vmatprep.subr.mxu0 0.0
    %1182 = vmatpush2.msra.mxu0 0.0
    %1183 = vmatprep.subr.mxu0 0.0
    %1184 = vmatpush2.msra.mxu0 0.0
    %1185 = vmatprep.subr.mxu0 0.0
    %1186 = vmatpush2.msra.mxu0 0.0
    %1187 = vmatprep.subr.mxu0 0.0
    %1188 = vmatpush2.msra.mxu0 0.0
    %1189 = vmatprep.subr.mxu0 0.0
    %1190 = vmatpush2.msra.mxu0 0.0
    %1191 = vmatprep.subr.mxu0 0.0
    %1192 = vmatpush2.msra.mxu0 0.0
    %1193 = vmatprep.subr.mxu0 0.0
    %1194 = vmatpush2.msra.mxu0 0.0
    %1195 = vmatprep.subr.mxu0 0.0
    %1196 = vmatpush2.msra.mxu0 0.0
    %1197 = vmatprep.subr.mxu0 0.0
    %1198 = vmatpush2.msra.mxu0 0.0
    %1199 = vmatprep.subr.mxu0 0.0
    %1200 = vmatpush2.msra.mxu0 0.0
    %1201 = vmatprep.subr.mxu0 0.0
    %1202 = vmatpush2.msra.mxu0 0.0
    %1203 = vmatprep.subr.mxu0 0.0
    %1204 = vmatpush2.msra.mxu0 0.0
    %1205 = vmatprep.mubr.f32.mxu0 0.0
    %v1206 = vand.u32 %v751, 4294901760
    %1207 = vmatmul.mubr.f32.gmra.mxu0 %v1206
    %v1208 = vpop.f32.mrf.mxu0
    %v1209 = vadd.f32 %v1136, %v1208
    %v1210 = vpop.f32.mrf.mxu0
    %1211 = vdwg.mxu0
    %v1212 = vld [vmem:[%s4] sm:$0x1]
    %v1214 = vlaneseq
    %v1215 = vshrl.u32 %v1214, 7
    %v1216 = vsub.s32 0, %v1215
    %v1217 = vrot.slane %v1212, %v1216
    %v1219 = vadd.f32 %v1209, %v1217
    %v1220 = vld [vmem:[#allocation7] sm:$0xff]
    %v1221 = vadd.f32 %v1220, %v1219
    %vm1222 = vcmask 261120
    %1223 = vst.msk [vmem:[#allocation8] sm:$0xff] %vm1222, %v1221
    // Predicated region
    $region38: #{gaussian_fourier_projection.1} parent=1 // pred_check
      _
    $region39: #{gaussian_fourier_projection.1} parent=1 // pred_check_branch
      %1225 = sbr.rel (0) target = $region41
    $region40: #{gaussian_fourier_projection.1} parent=1 // pred_region
      %s1227 = ssub.s32 128, 128
      %1228 = vsyncadd [#allocation4], %s1227
      %s1230 = sshll.u32 [#allocation8], 4
      %s1231 = int_to_ptr.vmem [resolvable:$true] %s1230
      %1233 = dma.vmem_to_hbm [thread:$0]  %s1231, 128, %s6, [#allocation4]
    $region41: #{gaussian_fourier_projection.1} parent=1 // pred_fallthru
      _
    // Predicated region
    $region42: #{gaussian_fourier_projection.1} parent=1 // pred_check
      _
    $region43: #{gaussian_fourier_projection.1} parent=1 // pred_check_branch
      %1235 = sbr.rel (0) target = $region45
    $region44: #{gaussian_fourier_projection.1} parent=1 // pred_region
      %1236 = dma.done [#allocation4], 128
    $region45: #{gaussian_fourier_projection.1} parent=1 // pred_fallthru
      _
    %1237 = vsyncpa [#allocation3], 1
    %1238 = vsyncpa [#allocation6], 1
    %1239 = vsyncpa [#allocation4], 1

</llo_original>
